<compile_context>
chip_gen: v5e
topology: v5e:2x2
jax: 0.10.0
libtpu: 0.0.40
codegen_flags: <defaults>
</compile_context>

<pallas_src>
import functools
import math

import jax
import jax.numpy as jnp
from jax.experimental import pallas as pl
from jax.experimental.pallas import tpu as pltpu


def _softmax_lastdim_approx(x):
    """Numerically-stable softmax over the last axis; divide goes to the EUP."""
    m = jnp.max(x, axis=-1, keepdims=True)
    e = jnp.exp(x - m)
    s = jnp.sum(e, axis=-1, keepdims=True)
    return e * pl.reciprocal(s, approx=True)


def _semantic_attn_kernel(q_ref, k_ref, v_ref, cp_ref,
                          wq_ref, wk_ref, wv_ref, bias_ref, expand_ref,
                          out_ref, *, compute_dtype):
    bt, n, e_in = q_ref.shape           # (block_b, N, embed_dim)
    _, cl, kd = k_ref.shape             # (block_b, C*L, kdim)
    vd = v_ref.shape[-1]
    c = cp_ref.shape[-1]                # num_class
    embed = wq_ref.shape[-1]
    scale = 1.0 / math.sqrt(embed)

    bias = bias_ref[...]                # (3, E): [bq; bk; bv]

    # ---- Q / K projections (V is deferred; see below) ----
    q2 = q_ref[...].reshape(bt * n, e_in).astype(compute_dtype)
    k2 = k_ref[...].reshape(bt * cl, kd).astype(compute_dtype)

    qp = jnp.dot(q2, wq_ref[...].astype(compute_dtype),
                 preferred_element_type=jnp.float32) + bias[0:1, :]
    kp = jnp.dot(k2, wk_ref[...].astype(compute_dtype),
                 preferred_element_type=jnp.float32) + bias[1:2, :]

    qp = (qp * scale).reshape(bt, n, embed)      # fold 1/sqrt(E) into qp
    kp = kp.reshape(bt, cl, embed)

    # ---- attention scores: contract last dims, no explicit kp transpose ----
    attn = jnp.einsum('bnd,bcd->bnc',
                      qp.astype(compute_dtype), kp.astype(compute_dtype),
                      preferred_element_type=jnp.float32)
    attn = _softmax_lastdim_approx(attn)         # (bt, N, CL)

    # ---- coarse_pred modulation ----
    # cp_ref already (bt, N, C) (transposed wrapper-side); softmax over classes,
    # then expand each class weight over its `length` columns with a constant 0/1
    # matrix on the MXU: cp_exp[b, n, c*L + l] = cp_sm[b, n, c].
    cp_sm = _softmax_lastdim_approx(cp_ref[...].astype(jnp.float32))   # (bt, N, C)
    cp_exp = jnp.dot(cp_sm.reshape(bt * n, c), expand_ref[...],
                     preferred_element_type=jnp.float32).reshape(bt, n, cl)

    # ---- final softmax: attn*cp in [0,1] -> exp cannot overflow, skip the max
    #      pass; exact divide here since it scales the output directly. ----
    ez = jnp.exp(attn * cp_exp)
    attn = ez / jnp.sum(ez, axis=-1, keepdims=True)

    # ---- deferred V projection + output ----
    v2 = v_ref[...].reshape(bt * cl, vd).astype(compute_dtype)
    vp = (jnp.dot(v2, wv_ref[...].astype(compute_dtype),
                  preferred_element_type=jnp.float32) + bias[2:3, :]
          ).reshape(bt, cl, embed)

    out = jnp.einsum('bnc,bcd->bnd',
                     attn.astype(compute_dtype), vp.astype(compute_dtype),
                     preferred_element_type=jnp.float32)
    # Lane-dense store: out_ref is (block_b, N*E), so the writeback uses full
    # 128-lane unmasked stores.
    out_ref[...] = out.reshape(bt, n * embed).astype(out_ref.dtype)


def _pick_block_b_and_vmem(b, n, cl, e_in, kd, vd, c, embed):
    """VMEM-budget + pipelining-aware choice of the batch block size."""
    def step_bytes(bb):
        io = bb * (n * e_in + cl * kd + cl * vd + n * c + n * embed) * 4
        inter = bb * (n * embed + 2 * cl * embed + 3 * n * cl) * 4
        return 2 * io + inter            # double-buffered I/O + live f32 intermediates
    weight_bytes = ((e_in + kd + vd) * embed + 3 * embed + c * cl) * 4 * 2

    budget = 24 * 1024 * 1024            # conservative: fits v5e/v6e/v7x with headroom

    flops = 2 * b * (n * e_in * embed + cl * (kd + vd) * embed + 2 * n * cl * embed)
    tiny = flops < 4e6                   # per-grid-step overhead would dominate
    target_steps = 1 if tiny else 4      # >= 2 steps per TensorCore on v7x

    # Candidate block sizes: divisors of b whose sublane dim in the (block_b, N*E)
    # output block is either the full batch or 8-aligned (Mosaic (8,128) rule).
    cands = [d for d in range(b, 0, -1) if b % d == 0 and (d == b or d % 8 == 0)]
    if not cands:
        cands = [b]
    feasible = [d for d in cands if step_bytes(d) + weight_bytes <= budget]
    if not feasible:
        feasible = [min(cands)]
    pref = [d for d in feasible if b // d >= target_steps]
    block_b = max(pref) if pref else max(feasible)

    needed = step_bytes(block_b) + weight_bytes
    vmem_limit = int(min(max(2 * needed, 32 << 20), 48 << 20))
    return block_b, vmem_limit, flops


def semantic_aware_attention_allepsc(q, k, v, length, coarse_pred,
                                     wq_t, bq, wk_t, bk, wv_t, bv,
                                     block_b=None, compute_dtype=jnp.bfloat16):
    """q: (B, N, E), k: (B, C*L, KD), v: (B, C*L, VD), coarse_pred: (B, C, N).
    Weights passed pre-transposed as (in, out); biases as (E,).
    compute_dtype affects MXU *operands* only; accumulation/softmax stay f32."""
    b, n, e_in = q.shape
    _, cl, kd = k.shape
    vd = v.shape[-1]
    c = coarse_pred.shape[1]
    embed = wq_t.shape[1]
    assert cl == c * length, "k/v rows must equal num_class * length"
    # N and CL should be multiples of 8 so the (bt*N, E)/(bt*CL, KD) collapses are
    # sublane-aligned no-ops (pad wrapper-side otherwise).

    picked_bb, vmem_limit, flops = _pick_block_b_and_vmem(b, n, cl, e_in, kd, vd, c, embed)
    if block_b is None:
        block_b = picked_bb
    assert b % block_b == 0
    grid = (b // block_b,)

    # Wrapper-side layout plumbing (done once by XLA, keeps XLU transposes out of kernel):
    cp_t = jnp.swapaxes(coarse_pred, 1, 2)                      # (B, N, C)
    bias = jnp.concatenate([jnp.reshape(bq, (1, -1)),
                            jnp.reshape(bk, (1, -1)),
                            jnp.reshape(bv, (1, -1))], axis=0)  # (3, E) -> single DMA
    expand = jnp.repeat(jnp.eye(c, dtype=jnp.float32), length, axis=1)  # (C, C*L)

    transcendentals = b * (2 * n * cl + n * c)
    bytes_accessed = 4 * (b * (n * e_in + cl * kd + cl * vd + n * c + n * embed)
                          + (e_in + kd + vd) * embed + 3 * embed + c * cl)
    cost = pl.CostEstimate(flops=int(flops),
                           transcendentals=int(transcendentals),
                           bytes_accessed=int(bytes_accessed))

    kernel = functools.partial(_semantic_attn_kernel, compute_dtype=compute_dtype)

    out_flat = pl.pallas_call(
        kernel,
        out_shape=jax.ShapeDtypeStruct((b, n * embed), jnp.float32),
        grid=grid,
        in_specs=[
            pl.BlockSpec((block_b, n, e_in), lambda i: (i, 0, 0)),   # q
            pl.BlockSpec((block_b, cl, kd), lambda i: (i, 0, 0)),    # k
            pl.BlockSpec((block_b, cl, vd), lambda i: (i, 0, 0)),    # v
            pl.BlockSpec((block_b, n, c), lambda i: (i, 0, 0)),      # coarse_pred^T
            pl.BlockSpec((e_in, embed), lambda i: (0, 0)),           # Wq^T (invariant)
            pl.BlockSpec((kd, embed), lambda i: (0, 0)),             # Wk^T (invariant)
            pl.BlockSpec((vd, embed), lambda i: (0, 0)),             # Wv^T (invariant)
            pl.BlockSpec((3, embed), lambda i: (0, 0)),              # [bq; bk; bv]
            pl.BlockSpec((c, cl), lambda i: (0, 0)),                 # class->CL expansion
        ],
        out_specs=pl.BlockSpec((block_b, n * embed), lambda i: (i, 0)),
        compiler_params=pltpu.CompilerParams(
            dimension_semantics=("parallel",),
            vmem_limit_bytes=vmem_limit),
        cost_estimate=cost,
    )(q, k, v, cp_t, wq_t, wk_t, wv_t, bias, expand)

    return out_flat.reshape(b, n, embed)


def reference_jax(q, k, v, length, coarse_pred, wq_t, bq, wk_t, bk, wv_t, bv):
    embed_dim = wq_t.shape[1]
    qp = q @ wq_t + bq
    kp = k @ wk_t + bk
    vp = v @ wv_t + bv
    attn = jnp.einsum('bnd,bcd->bnc', qp, kp) / math.sqrt(embed_dim)
    attn = jax.nn.softmax(attn, axis=-1)
    cp = jax.nn.softmax(jnp.swapaxes(coarse_pred, 1, 2), axis=-1)
    cp = jnp.repeat(cp, length, axis=-1)         # == unsqueeze+expand+flatten
    attn = jax.nn.softmax(attn * cp, axis=-1)
    return jnp.einsum('bnc,bcd->bnd', attn, vp)


if __name__ == "__main__":
    # Small shapes consistent with the module's forward.
    B, N, C, L = 4, 8, 4, 8                  # batch, queries, num_class, length
    CL = C * L                               # k/v sequence length
    EMBED, KDIM, VDIM = 32, 16, 16

    key = jax.random.PRNGKey(0)
    keys = jax.random.split(key, 10)

    q = jax.random.normal(keys[0], (B, N, EMBED), jnp.float32)
    k = jax.random.normal(keys[1], (B, CL, KDIM), jnp.float32)
    v = jax.random.normal(keys[2], (B, CL, VDIM), jnp.float32)
    coarse_pred = jax.random.normal(keys[3], (B, C, N), jnp.float32)

    # nn.Linear-style params, stored transposed as (in, out).
    wq_t = jax.random.normal(keys[4], (EMBED, EMBED), jnp.float32) * 0.05
    bq = jax.random.normal(keys[5], (EMBED,), jnp.float32) * 0.05
    wk_t = jax.random.normal(keys[6], (KDIM, EMBED), jnp.float32) * 0.05
    bk = jax.random.normal(keys[7], (EMBED,), jnp.float32) * 0.05
    wv_t = jax.random.normal(keys[8], (VDIM, EMBED), jnp.float32) * 0.05
    bv = jax.random.normal(keys[9], (EMBED,), jnp.float32) * 0.05

    ref = reference_jax(q, k, v, L, coarse_pred, wq_t, bq, wk_t, bk, wv_t, bv)

    # Default path: bf16 MXU operands, f32 accumulation / softmax.
    out_bf16 = semantic_aware_attention_allepsc(q, k, v, L, coarse_pred,
                                                wq_t, bq, wk_t, bk, wv_t, bv)
    out_bf16 = jax.block_until_ready(out_bf16)
    assert out_bf16.shape == (B, N, EMBED)
    assert jnp.allclose(out_bf16, ref, atol=2e-2, rtol=2e-2), "bf16-path mismatch vs reference"

    # Full f32 path: tight tolerance (only inner softmaxes use the approx reciprocal).
    out_f32 = semantic_aware_attention_allepsc(q, k, v, L, coarse_pred,
                                               wq_t, bq, wk_t, bk, wv_t, bv,
                                               compute_dtype=jnp.float32)
    out_f32 = jax.block_until_ready(out_f32)
    assert jnp.allclose(out_f32, ref, atol=5e-3, rtol=1e-3), "f32-path mismatch vs reference"

    print("KERNEL_OK")
</pallas_src>

<mosaic_0001>
module attributes {stable_mosaic.version = 11 : i64} {
  func.func @_semantic_attn_kernel(%arg0: i32, %arg1: memref<4x8x32xf32, #tpu.memory_space<vmem>>, %arg2: memref<4x32x16xf32, #tpu.memory_space<vmem>>, %arg3: memref<4x32x16xf32, #tpu.memory_space<vmem>>, %arg4: memref<4x8x4xf32, #tpu.memory_space<vmem>>, %arg5: memref<32x32xf32, #tpu.memory_space<vmem>>, %arg6: memref<16x32xf32, #tpu.memory_space<vmem>>, %arg7: memref<16x32xf32, #tpu.memory_space<vmem>>, %arg8: memref<3x32xf32, #tpu.memory_space<vmem>>, %arg9: memref<4x32xf32, #tpu.memory_space<vmem>>, %arg10: memref<4x256xf32, #tpu.memory_space<vmem>>) attributes {dimension_semantics = [#tpu.dimension_semantics<parallel>], iteration_bounds = array<i64: 1>, scalar_prefetch = 0 : i64, scratch_operands = 0 : i64, tpu.core_type = #tpu.core_type<tc>, window_params = [{transform_indices = @transform_0, window_bounds = array<i64: 4, 8, 32>}, {transform_indices = @transform_1, window_bounds = array<i64: 4, 32, 16>}, {transform_indices = @transform_2, window_bounds = array<i64: 4, 32, 16>}, {transform_indices = @transform_3, window_bounds = array<i64: 4, 8, 4>}, {pipeline_mode = #tpu.pipeline_mode<synchronous>, transform_indices = @transform_4, window_bounds = array<i64: 32, 32>}, {pipeline_mode = #tpu.pipeline_mode<synchronous>, transform_indices = @transform_5, window_bounds = array<i64: 16, 32>}, {pipeline_mode = #tpu.pipeline_mode<synchronous>, transform_indices = @transform_6, window_bounds = array<i64: 16, 32>}, {pipeline_mode = #tpu.pipeline_mode<synchronous>, transform_indices = @transform_7, window_bounds = array<i64: 3, 32>}, {pipeline_mode = #tpu.pipeline_mode<synchronous>, transform_indices = @transform_8, window_bounds = array<i64: 4, 32>}, {transform_indices = @transform_9, window_bounds = array<i64: 4, 256>}]} {
    %c0 = arith.constant 0 : index
    %c0_0 = arith.constant 0 : index
    %0 = vector.load %arg8[%c0, %c0_0] : memref<3x32xf32, #tpu.memory_space<vmem>>, vector<3x32xf32>
    %c0_1 = arith.constant 0 : index
    %c0_2 = arith.constant 0 : index
    %c0_3 = arith.constant 0 : index
    %1 = vector.load %arg1[%c0_1, %c0_2, %c0_3] : memref<4x8x32xf32, #tpu.memory_space<vmem>>, vector<4x8x32xf32>
    %2 = vector.shape_cast %1 : vector<4x8x32xf32> to vector<32x32xf32>
    %3 = arith.truncf %2 : vector<32x32xf32> to vector<32x32xbf16>
    %c0_4 = arith.constant 0 : index
    %c0_5 = arith.constant 0 : index
    %c0_6 = arith.constant 0 : index
    %4 = vector.load %arg2[%c0_4, %c0_5, %c0_6] : memref<4x32x16xf32, #tpu.memory_space<vmem>>, vector<4x32x16xf32>
    %5 = vector.shape_cast %4 : vector<4x32x16xf32> to vector<128x16xf32>
    %6 = arith.truncf %5 : vector<128x16xf32> to vector<128x16xbf16>
    %c0_7 = arith.constant 0 : index
    %c0_8 = arith.constant 0 : index
    %7 = vector.load %arg5[%c0_7, %c0_8] : memref<32x32xf32, #tpu.memory_space<vmem>>, vector<32x32xf32>
    %8 = arith.truncf %7 : vector<32x32xf32> to vector<32x32xbf16>
    %cst = arith.constant dense<0.000000e+00> : vector<32x32xf32>
    %9 = tpu.matmul %3, %8, %cst {dimension_numbers = #tpu.dot_dimension_numbers<[1], [0], [0], [1], [0, 0, 1, 1], [], []>} : vector<32x32xbf16>, vector<32x32xbf16>, vector<32x32xf32> -> vector<32x32xf32>
    %10 = vector.extract_strided_slice %0 {offsets = [0, 0], sizes = [1, 32], strides = [1, 1]} : vector<3x32xf32> to vector<1x32xf32>
    %11 = vector.broadcast %10 : vector<1x32xf32> to vector<32x32xf32>
    %12 = arith.addf %9, %11 : vector<32x32xf32>
    %c0_9 = arith.constant 0 : index
    %c0_10 = arith.constant 0 : index
    %13 = vector.load %arg6[%c0_9, %c0_10] : memref<16x32xf32, #tpu.memory_space<vmem>>, vector<16x32xf32>
    %14 = arith.truncf %13 : vector<16x32xf32> to vector<16x32xbf16>
    %cst_11 = arith.constant dense<0.000000e+00> : vector<128x32xf32>
    %15 = tpu.matmul %6, %14, %cst_11 {dimension_numbers = #tpu.dot_dimension_numbers<[1], [0], [0], [1], [0, 0, 1, 1], [], []>} : vector<128x16xbf16>, vector<16x32xbf16>, vector<128x32xf32> -> vector<128x32xf32>
    %16 = vector.extract_strided_slice %0 {offsets = [1, 0], sizes = [1, 32], strides = [1, 1]} : vector<3x32xf32> to vector<1x32xf32>
    %17 = vector.broadcast %16 : vector<1x32xf32> to vector<128x32xf32>
    %18 = arith.addf %15, %17 : vector<128x32xf32>
    %cst_12 = arith.constant 0.176776692 : f32
    %19 = vector.broadcast %cst_12 : f32 to vector<32x32xf32>
    %20 = arith.mulf %12, %19 : vector<32x32xf32>
    %21 = vector.shape_cast %20 : vector<32x32xf32> to vector<4x8x32xf32>
    %22 = vector.shape_cast %18 : vector<128x32xf32> to vector<4x32x32xf32>
    %23 = arith.truncf %21 : vector<4x8x32xf32> to vector<4x8x32xbf16>
    %24 = arith.truncf %22 : vector<4x32x32xf32> to vector<4x32x32xbf16>
    "tpu.trace_start"() <{level = 10 : i32, message = "bnd,bcd->bnc"}> : () -> ()
    %cst_13 = arith.constant dense<0.000000e+00> : vector<4x8x32xf32>
    %25 = tpu.matmul %23, %24, %cst_13 {dimension_numbers = #tpu.dot_dimension_numbers<[2], [2], [1], [1], [0, 0, 0, 1, 1, 1], [0], [0]>} : vector<4x8x32xbf16>, vector<4x32x32xbf16>, vector<4x8x32xf32> -> vector<4x8x32xf32>
    "tpu.trace_stop"() : () -> ()
    %cst_14 = arith.constant dense<0xFF800000> : vector<4x8xf32>
    %26 = vector.multi_reduction <maximumf>, %25, %cst_14 [2] : vector<4x8x32xf32> to vector<4x8xf32>
    %27 = vector.shape_cast %26 : vector<4x8xf32> to vector<4x8x1xf32>
    %28 = vector.broadcast %27 : vector<4x8x1xf32> to vector<4x8x32xf32>
    %29 = arith.subf %25, %28 : vector<4x8x32xf32>
    %30 = math.exp %29 : vector<4x8x32xf32>
    %cst_15 = arith.constant dense<0.000000e+00> : vector<4x8xf32>
    %31 = vector.multi_reduction <add>, %30, %cst_15 [2] : vector<4x8x32xf32> to vector<4x8xf32>
    %32 = vector.shape_cast %31 : vector<4x8xf32> to vector<4x8x1xf32>
    %33 = tpu.reciprocal %32 {approx = true} : vector<4x8x1xf32> -> vector<4x8x1xf32>
    %34 = vector.broadcast %33 : vector<4x8x1xf32> to vector<4x8x32xf32>
    %35 = arith.mulf %30, %34 : vector<4x8x32xf32>
    %c0_16 = arith.constant 0 : index
    %c0_17 = arith.constant 0 : index
    %c0_18 = arith.constant 0 : index
    %36 = vector.load %arg4[%c0_16, %c0_17, %c0_18] : memref<4x8x4xf32, #tpu.memory_space<vmem>>, vector<4x8x4xf32>
    %cst_19 = arith.constant dense<0xFF800000> : vector<4x8xf32>
    %37 = vector.multi_reduction <maximumf>, %36, %cst_19 [2] : vector<4x8x4xf32> to vector<4x8xf32>
    %38 = vector.shape_cast %37 : vector<4x8xf32> to vector<4x8x1xf32>
    %39 = vector.broadcast %38 : vector<4x8x1xf32> to vector<4x8x4xf32>
    %40 = arith.subf %36, %39 : vector<4x8x4xf32>
    %41 = math.exp %40 : vector<4x8x4xf32>
    %cst_20 = arith.constant dense<0.000000e+00> : vector<4x8xf32>
    %42 = vector.multi_reduction <add>, %41, %cst_20 [2] : vector<4x8x4xf32> to vector<4x8xf32>
    %43 = vector.shape_cast %42 : vector<4x8xf32> to vector<4x8x1xf32>
    %44 = tpu.reciprocal %43 {approx = true} : vector<4x8x1xf32> -> vector<4x8x1xf32>
    %45 = vector.broadcast %44 : vector<4x8x1xf32> to vector<4x8x4xf32>
    %46 = arith.mulf %41, %45 : vector<4x8x4xf32>
    %47 = vector.shape_cast %46 : vector<4x8x4xf32> to vector<32x4xf32>
    %c0_21 = arith.constant 0 : index
    %c0_22 = arith.constant 0 : index
    %48 = vector.load %arg9[%c0_21, %c0_22] : memref<4x32xf32, #tpu.memory_space<vmem>>, vector<4x32xf32>
    %cst_23 = arith.constant dense<0.000000e+00> : vector<32x32xf32>
    %49 = tpu.matmul %47, %48, %cst_23 {dimension_numbers = #tpu.dot_dimension_numbers<[1], [0], [0], [1], [0, 0, 1, 1], [], []>} : vector<32x4xf32>, vector<4x32xf32>, vector<32x32xf32> -> vector<32x32xf32>
    %50 = vector.shape_cast %49 : vector<32x32xf32> to vector<4x8x32xf32>
    %51 = arith.mulf %35, %50 : vector<4x8x32xf32>
    %52 = math.exp %51 : vector<4x8x32xf32>
    %cst_24 = arith.constant dense<0.000000e+00> : vector<4x8xf32>
    %53 = vector.multi_reduction <add>, %52, %cst_24 [2] : vector<4x8x32xf32> to vector<4x8xf32>
    %54 = vector.shape_cast %53 : vector<4x8xf32> to vector<4x8x1xf32>
    %55 = vector.broadcast %54 : vector<4x8x1xf32> to vector<4x8x32xf32>
    %56 = arith.divf %52, %55 : vector<4x8x32xf32>
    %c0_25 = arith.constant 0 : index
    %c0_26 = arith.constant 0 : index
    %c0_27 = arith.constant 0 : index
    %57 = vector.load %arg3[%c0_25, %c0_26, %c0_27] : memref<4x32x16xf32, #tpu.memory_space<vmem>>, vector<4x32x16xf32>
    %58 = vector.shape_cast %57 : vector<4x32x16xf32> to vector<128x16xf32>
    %59 = arith.truncf %58 : vector<128x16xf32> to vector<128x16xbf16>
    %c0_28 = arith.constant 0 : index
    %c0_29 = arith.constant 0 : index
    %60 = vector.load %arg7[%c0_28, %c0_29] : memref<16x32xf32, #tpu.memory_space<vmem>>, vector<16x32xf32>
    %61 = arith.truncf %60 : vector<16x32xf32> to vector<16x32xbf16>
    %cst_30 = arith.constant dense<0.000000e+00> : vector<128x32xf32>
    %62 = tpu.matmul %59, %61, %cst_30 {dimension_numbers = #tpu.dot_dimension_numbers<[1], [0], [0], [1], [0, 0, 1, 1], [], []>} : vector<128x16xbf16>, vector<16x32xbf16>, vector<128x32xf32> -> vector<128x32xf32>
    %63 = vector.extract_strided_slice %0 {offsets = [2, 0], sizes = [1, 32], strides = [1, 1]} : vector<3x32xf32> to vector<1x32xf32>
    %64 = vector.broadcast %63 : vector<1x32xf32> to vector<128x32xf32>
    %65 = arith.addf %62, %64 : vector<128x32xf32>
    %66 = vector.shape_cast %65 : vector<128x32xf32> to vector<4x32x32xf32>
    %67 = arith.truncf %56 : vector<4x8x32xf32> to vector<4x8x32xbf16>
    %68 = arith.truncf %66 : vector<4x32x32xf32> to vector<4x32x32xbf16>
    "tpu.trace_start"() <{level = 10 : i32, message = "bnc,bcd->bnd"}> : () -> ()
    %cst_31 = arith.constant dense<0.000000e+00> : vector<4x8x32xf32>
    %69 = tpu.matmul %67, %68, %cst_31 {dimension_numbers = #tpu.dot_dimension_numbers<[2], [1], [1], [2], [0, 0, 0, 1, 1, 2], [0], [0]>} : vector<4x8x32xbf16>, vector<4x32x32xbf16>, vector<4x8x32xf32> -> vector<4x8x32xf32>
    "tpu.trace_stop"() : () -> ()
    %70 = vector.shape_cast %69 : vector<4x8x32xf32> to vector<4x256xf32>
    %c0_32 = arith.constant 0 : index
    %c0_33 = arith.constant 0 : index
    %71 = vector.load %arg10[%c0_32, %c0_33] : memref<4x256xf32, #tpu.memory_space<vmem>>, vector<4x256xf32>
    tpu.vector_store %arg10[%c0_32, %c0_33], %70 {strides = array<i32>} : memref<4x256xf32, #tpu.memory_space<vmem>>, vector<4x256xf32>,
    return
  }
  func.func @transform_0(%arg0: i32) -> (i32, i32, i32) {
    %c0_i32 = arith.constant 0 : i32
    %c0_i32_0 = arith.constant 0 : i32
    %c0_i32_1 = arith.constant 0 : i32
    return %arg0, %c0_i32, %c0_i32_0 : i32, i32, i32
  }
  func.func @transform_1(%arg0: i32) -> (i32, i32, i32) {
    %c0_i32 = arith.constant 0 : i32
    %c0_i32_0 = arith.constant 0 : i32
    %c0_i32_1 = arith.constant 0 : i32
    return %arg0, %c0_i32, %c0_i32_0 : i32, i32, i32
  }
  func.func @transform_2(%arg0: i32) -> (i32, i32, i32) {
    %c0_i32 = arith.constant 0 : i32
    %c0_i32_0 = arith.constant 0 : i32
    %c0_i32_1 = arith.constant 0 : i32
    return %arg0, %c0_i32, %c0_i32_0 : i32, i32, i32
  }
  func.func @transform_3(%arg0: i32) -> (i32, i32, i32) {
    %c0_i32 = arith.constant 0 : i32
    %c0_i32_0 = arith.constant 0 : i32
    %c0_i32_1 = arith.constant 0 : i32
    return %arg0, %c0_i32, %c0_i32_0 : i32, i32, i32
  }
  func.func @transform_4(%arg0: i32) -> (i32, i32) {
    %c0_i32 = arith.constant 0 : i32
    %c0_i32_0 = arith.constant 0 : i32
    %c0_i32_1 = arith.constant 0 : i32
    return %c0_i32, %c0_i32_0 : i32, i32
  }
  func.func @transform_5(%arg0: i32) -> (i32, i32) {
    %c0_i32 = arith.constant 0 : i32
    %c0_i32_0 = arith.constant 0 : i32
    %c0_i32_1 = arith.constant 0 : i32
    return %c0_i32, %c0_i32_0 : i32, i32
  }
  func.func @transform_6(%arg0: i32) -> (i32, i32) {
    %c0_i32 = arith.constant 0 : i32
    %c0_i32_0 = arith.constant 0 : i32
    %c0_i32_1 = arith.constant 0 : i32
    return %c0_i32, %c0_i32_0 : i32, i32
  }
  func.func @transform_7(%arg0: i32) -> (i32, i32) {
    %c0_i32 = arith.constant 0 : i32
    %c0_i32_0 = arith.constant 0 : i32
    %c0_i32_1 = arith.constant 0 : i32
    return %c0_i32, %c0_i32_0 : i32, i32
  }
  func.func @transform_8(%arg0: i32) -> (i32, i32) {
    %c0_i32 = arith.constant 0 : i32
    %c0_i32_0 = arith.constant 0 : i32
    %c0_i32_1 = arith.constant 0 : i32
    return %c0_i32, %c0_i32_0 : i32, i32
  }
  func.func @transform_9(%arg0: i32) -> (i32, i32) {
    %c0_i32 = arith.constant 0 : i32
    %c0_i32_0 = arith.constant 0 : i32
    return %arg0, %c0_i32 : i32, i32
  }
}

</mosaic_0001>

<llo_original>
// kernel: tpu_custom_call.1
$region0: #{tpu_custom_call.1}
  #allocation0 [shape = 'u32[]', space=smem, size = 0x4, offset = 0x4, fixed_abs, tag = 'smem constant byte address 0x4 - core index']
  #allocation1 [shape = 'u32[72,128]{1,0:T(1,128)}', space=vmem, size = 0x9000, scoped, tag = 'internal scratch']
  %s0 = inlined_call_operand.vmem [shape: f32[4,8,32], index: 0, kind: input, shape index: {}]
  %s1 = inlined_call_operand.vmem [shape: f32[4,32,16], index: 1, kind: input, shape index: {}]
  %s2 = inlined_call_operand.vmem [shape: f32[4,32,16], index: 2, kind: input, shape index: {}]
  %s3 = inlined_call_operand.vmem [shape: f32[4,8,4], index: 3, kind: input, shape index: {}]
  %s4 = inlined_call_operand.vmem [shape: f32[32,32], index: 4, kind: input, shape index: {}]
  %s5 = inlined_call_operand.vmem [shape: f32[16,32], index: 5, kind: input, shape index: {}]
  %s6 = inlined_call_operand.vmem [shape: f32[16,32], index: 6, kind: input, shape index: {}]
  %s7 = inlined_call_operand.vmem [shape: f32[3,32], index: 7, kind: input, shape index: {}]
  %s8 = inlined_call_operand.vmem [shape: f32[4,32], index: 8, kind: input, shape index: {}]
  %s9 = inlined_call_operand.hbm [shape: f32[4,256], index: 9, kind: output, shape index: {}]
  %s10 = sld [smem:[#allocation0]]
  $region46: #{tpu_custom_call.1} parent=0
    _
  %s12 = ssub.s32 1, %s10
  %s13 = scalar_select 0, %s12, %s10
  $region1: #{tpu_custom_call.1} parent=0
    #allocation2 [shape = 'u8[4096]{0}', space=vmem, size = 0x1000, scoped, tag = 'output window, operand 0, single buffered']
    #allocation3 [shape = 's32[1]{0}', space=sflag, size = 0x4, scoped, tag = 'scoped memory for tpu_custom_call.1']
    %14 = vsyncpa [#allocation3], 0
    // Predicated region
    $region2: #{tpu_custom_call.1} parent=1 // pred_check
      _
    $region3: #{tpu_custom_call.1} parent=1 // pred_check_branch
      %16 = sbr.rel (0) target = $region5
    $region4: #{tpu_custom_call.1} parent=1 // pred_region
      _
    $region5: #{tpu_custom_call.1} parent=1 // pred_fallthru
      _
    // Predicated region
    $region6: #{tpu_custom_call.1} parent=1 // pred_check
      _
    $region7: #{tpu_custom_call.1} parent=1 // pred_check_branch
      %18 = sbr.rel (0) target = $region9
    $region8: #{tpu_custom_call.1} parent=1 // pred_region
      _
    $region9: #{tpu_custom_call.1} parent=1 // pred_fallthru
      _
    // Predicated region
    $region10: #{tpu_custom_call.1} parent=1 // pred_check
      _
    $region11: #{tpu_custom_call.1} parent=1 // pred_check_branch
      %20 = sbr.rel (0) target = $region13
    $region12: #{tpu_custom_call.1} parent=1 // pred_region
      _
    $region13: #{tpu_custom_call.1} parent=1 // pred_fallthru
      _
    // Predicated region
    $region14: #{tpu_custom_call.1} parent=1 // pred_check
      _
    $region15: #{tpu_custom_call.1} parent=1 // pred_check_branch
      %22 = sbr.rel (0) target = $region17
    $region16: #{tpu_custom_call.1} parent=1 // pred_region
      _
    $region17: #{tpu_custom_call.1} parent=1 // pred_fallthru
      _
    // Predicated region
    $region18: #{tpu_custom_call.1} parent=1 // pred_check
      _
    $region19: #{tpu_custom_call.1} parent=1 // pred_check_branch
      %24 = sbr.rel (0) target = $region21
    $region20: #{tpu_custom_call.1} parent=1 // pred_region
      _
    $region21: #{tpu_custom_call.1} parent=1 // pred_fallthru
      _
    // Predicated region
    $region22: #{tpu_custom_call.1} parent=1 // pred_check
      _
    $region23: #{tpu_custom_call.1} parent=1 // pred_check_branch
      %26 = sbr.rel (0) target = $region25
    $region24: #{tpu_custom_call.1} parent=1 // pred_region
      _
    $region25: #{tpu_custom_call.1} parent=1 // pred_fallthru
      _
    // Predicated region
    $region26: #{tpu_custom_call.1} parent=1 // pred_check
      _
    $region27: #{tpu_custom_call.1} parent=1 // pred_check_branch
      %28 = sbr.rel (0) target = $region29
    $region28: #{tpu_custom_call.1} parent=1 // pred_region
      _
    $region29: #{tpu_custom_call.1} parent=1 // pred_fallthru
      _
    // Predicated region
    $region30: #{tpu_custom_call.1} parent=1 // pred_check
      _
    $region31: #{tpu_custom_call.1} parent=1 // pred_check_branch
      %30 = sbr.rel (0) target = $region33
    $region32: #{tpu_custom_call.1} parent=1 // pred_region
      _
    $region33: #{tpu_custom_call.1} parent=1 // pred_fallthru
      _
    // Predicated region
    $region34: #{tpu_custom_call.1} parent=1 // pred_check
      _
    $region35: #{tpu_custom_call.1} parent=1 // pred_check_branch
      %32 = sbr.rel (0) target = $region37
    $region36: #{tpu_custom_call.1} parent=1 // pred_region
      _
    $region37: #{tpu_custom_call.1} parent=1 // pred_fallthru
      _
    %v34 = vld [vmem:[%s7] sm:$0x7]
    %v35 = vld [vmem:[%s0] sm:$0xff]
    %v36 = vld [vmem:[%s0 + $0x8] sm:$0xff]
    %v37 = vld [vmem:[%s0 + $0x10] sm:$0xff]
    %v38 = vld [vmem:[%s0 + $0x18] sm:$0xff]
    %v39 = vpack.c.bf16 %v36, %v35
    %v40 = vpack.c.bf16 %v38, %v37
    %v41 = vld [vmem:[%s1] sm:$0xff]
    %v42 = vld [vmem:[%s1 + $0x8] sm:$0xff]
    %v43 = vld [vmem:[%s1 + $0x10] sm:$0xff]
    %v44 = vld [vmem:[%s1 + $0x18] sm:$0xff]
    %v45 = vld [vmem:[%s1 + $0x20] sm:$0xff]
    %v46 = vld [vmem:[%s1 + $0x28] sm:$0xff]
    %v47 = vld [vmem:[%s1 + $0x30] sm:$0xff]
    %v48 = vld [vmem:[%s1 + $0x38] sm:$0xff]
    %v49 = vld [vmem:[%s1 + $0x40] sm:$0xff]
    %v50 = vld [vmem:[%s1 + $0x48] sm:$0xff]
    %v51 = vld [vmem:[%s1 + $0x50] sm:$0xff]
    %v52 = vld [vmem:[%s1 + $0x58] sm:$0xff]
    %v53 = vld [vmem:[%s1 + $0x60] sm:$0xff]
    %v54 = vld [vmem:[%s1 + $0x68] sm:$0xff]
    %v55 = vld [vmem:[%s1 + $0x70] sm:$0xff]
    %v56 = vld [vmem:[%s1 + $0x78] sm:$0xff]
    %v57 = vpack.c.bf16 %v42, %v41
    %v58 = vpack.c.bf16 %v44, %v43
    %v59 = vpack.c.bf16 %v46, %v45
    %v60 = vpack.c.bf16 %v48, %v47
    %v61 = vpack.c.bf16 %v50, %v49
    %v62 = vpack.c.bf16 %v52, %v51
    %v63 = vpack.c.bf16 %v54, %v53
    %v64 = vpack.c.bf16 %v56, %v55
    %v65 = vld [vmem:[%s4] sm:$0xff]
    %v66 = vld [vmem:[%s4 + $0x8] sm:$0xff]
    %v67 = vld [vmem:[%s4 + $0x10] sm:$0xff]
    %v68 = vld [vmem:[%s4 + $0x18] sm:$0xff]
    %v69 = vpack.c.bf16 %v66, %v65
    %v70 = vpack.c.bf16 %v68, %v67
    %v71 = vperm.slane %v34, 0
    %vm72 = vcmask 261120
    %v74 = vsel %vm72, %v39, 0
    %v77 = vsel %vm72, %v40, 0
    %79 = vmatpush.bf16.msra.mxu0 0
    %80 = vmatpush.bf16.msra.mxu0 0
    %81 = vmatpush.bf16.msra.mxu0 0
    %82 = vmatpush.bf16.msra.mxu0 0
    %83 = vmatpush.bf16.msra.mxu0 0
    %84 = vmatpush.bf16.msra.mxu0 0
    %85 = vmatpush.bf16.msra.mxu0 %v70
    %86 = vmatpush.bf16.msra.mxu0 %v69
    %87 = vmatmul.bf16.gmra.mxu0 %v74
    %v88 = vpop.f32.mrf.mxu0
    %v89 = vadd.f32 %v71, %v88
    %v90 = vpop.f32.mrf.mxu0
    %v91 = vadd.f32 %v71, %v90
    %92 = vmatmul.bf16.gmra.mxu0 %v77
    %v93 = vpop.f32.mrf.mxu0
    %v94 = vadd.f32 %v71, %v93
    %v95 = vpop.f32.mrf.mxu0
    %v96 = vadd.f32 %v71, %v95
    %97 = vdwg.mxu0
    %v98 = vld [vmem:[%s5] sm:$0xff]
    %v99 = vld [vmem:[%s5 + $0x8] sm:$0xff]
    %v100 = vpack.c.bf16 %v99, %v98
    %v101 = vperm.slane %v34, 1
    %vm102 = vcmask 130048
    %v104 = vsel %vm102, %v57, 0
    %v107 = vsel %vm102, %v58, 0
    %v110 = vsel %vm102, %v59, 0
    %v113 = vsel %vm102, %v60, 0
    %v116 = vsel %vm102, %v61, 0
    %v119 = vsel %vm102, %v62, 0
    %v122 = vsel %vm102, %v63, 0
    %v125 = vsel %vm102, %v64, 0
    %127 = vmatpush.bf16.msra.mxu0 0
    %128 = vmatpush.bf16.msra.mxu0 0
    %129 = vmatpush.bf16.msra.mxu0 0
    %130 = vmatpush.bf16.msra.mxu0 0
    %131 = vmatpush.bf16.msra.mxu0 0
    %132 = vmatpush.bf16.msra.mxu0 0
    %133 = vmatpush.bf16.msra.mxu0 0
    %134 = vmatpush.bf16.msra.mxu0 %v100
    %135 = vmatmul.bf16.gmra.mxu0 %v104
    %v136 = vpop.f32.mrf.mxu0
    %v137 = vadd.f32 %v101, %v136
    %v138 = vpop.f32.mrf.mxu0
    %v139 = vadd.f32 %v101, %v138
    %140 = vmatmul.bf16.gmra.mxu0 %v107
    %v141 = vpop.f32.mrf.mxu0
    %v142 = vadd.f32 %v101, %v141
    %v143 = vpop.f32.mrf.mxu0
    %v144 = vadd.f32 %v101, %v143
    %145 = vmatmul.bf16.gmra.mxu0 %v110
    %v146 = vpop.f32.mrf.mxu0
    %v147 = vadd.f32 %v101, %v146
    %v148 = vpop.f32.mrf.mxu0
    %v149 = vadd.f32 %v101, %v148
    %150 = vmatmul.bf16.gmra.mxu0 %v113
    %v151 = vpop.f32.mrf.mxu0
    %v152 = vadd.f32 %v101, %v151
    %v153 = vpop.f32.mrf.mxu0
    %v154 = vadd.f32 %v101, %v153
    %155 = vmatmul.bf16.gmra.mxu0 %v116
    %v156 = vpop.f32.mrf.mxu0
    %v157 = vadd.f32 %v101, %v156
    %v158 = vpop.f32.mrf.mxu0
    %v159 = vadd.f32 %v101, %v158
    %160 = vmatmul.bf16.gmra.mxu0 %v119
    %v161 = vpop.f32.mrf.mxu0
    %v162 = vadd.f32 %v101, %v161
    %v163 = vpop.f32.mrf.mxu0
    %v164 = vadd.f32 %v101, %v163
    %165 = vmatmul.bf16.gmra.mxu0 %v122
    %v166 = vpop.f32.mrf.mxu0
    %v167 = vadd.f32 %v101, %v166
    %v168 = vpop.f32.mrf.mxu0
    %v169 = vadd.f32 %v101, %v168
    %170 = vmatmul.bf16.gmra.mxu0 %v125
    %v171 = vpop.f32.mrf.mxu0
    %v172 = vadd.f32 %v101, %v171
    %v173 = vpop.f32.mrf.mxu0
    %v174 = vadd.f32 %v101, %v173
    %175 = vdwg.mxu0
    %v176 = vmul.f32 %v89, 0.17677669
    %v177 = vmul.f32 %v91, 0.17677669
    %v178 = vmul.f32 %v94, 0.17677669
    %v179 = vmul.f32 %v96, 0.17677669
    %v180 = vpack.c.bf16 %v176, %v176
    %v181 = vpack.c.bf16 %v177, %v177
    %v182 = vpack.c.bf16 %v178, %v178
    %v183 = vpack.c.bf16 %v179, %v179
    %v184 = vpack.c.bf16 %v137, %v137
    %v185 = vpack.c.bf16 %v139, %v139
    %v186 = vpack.c.bf16 %v142, %v142
    %v187 = vpack.c.bf16 %v144, %v144
    %v188 = vpack.c.bf16 %v147, %v147
    %v189 = vpack.c.bf16 %v149, %v149
    %v190 = vpack.c.bf16 %v152, %v152
    %v191 = vpack.c.bf16 %v154, %v154
    %v192 = vpack.c.bf16 %v157, %v157
    %v193 = vpack.c.bf16 %v159, %v159
    %v194 = vpack.c.bf16 %v162, %v162
    %v195 = vpack.c.bf16 %v164, %v164
    %v196 = vpack.c.bf16 %v167, %v167
    %v197 = vpack.c.bf16 %v169, %v169
    %v198 = vpack.c.bf16 %v172, %v172
    %v199 = vpack.c.bf16 %v174, %v174
    %v204 = vunpack.c.l.b16 %v184
    %v205 = vunpack.c.l.b16 %v185
    %v206 = vunpack.c.l.b16 %v186
    %v207 = vunpack.c.l.b16 %v187
    %v208 = vpack.c.b16 %v205, %v204
    %v209 = vpack.c.b16 %v207, %v206
    %v211 = vsel %vm72, %v180, 0
    %v214 = vsel %vm72, %v208, 0
    %v217 = vsel %vm72, %v209, 0
    %219 = vmatpush.bf16.xpose.msra.mxu0 0
    %220 = vmatpush.bf16.xpose.msra.mxu0 0
    %221 = vmatpush.bf16.xpose.msra.mxu0 0
    %222 = vmatpush.bf16.xpose.msra.mxu0 0
    %223 = vmatpush.bf16.xpose.msra.mxu0 0
    %224 = vmatpush.bf16.xpose.msra.mxu0 0
    %225 = vmatpush.bf16.xpose.msra.mxu0 %v217
    %226 = vmatpush.bf16.xpose.msra.mxu0 %v214
    %227 = vmatmul.bf16.gmra.mxu0 %v211
    %v228 = vpop.f32.mrf.mxu0
    %v229 = vadd.f32 0.0, %v228
    %v230 = vpop.f32.mrf.mxu0
    %231 = vdwg.mxu0
    %v236 = vunpack.c.l.b16 %v188
    %v237 = vunpack.c.l.b16 %v189
    %v238 = vunpack.c.l.b16 %v190
    %v239 = vunpack.c.l.b16 %v191
    %v240 = vpack.c.b16 %v237, %v236
    %v241 = vpack.c.b16 %v239, %v238
    %v243 = vsel %vm72, %v181, 0
    %v246 = vsel %vm72, %v240, 0
    %v249 = vsel %vm72, %v241, 0
    %251 = vmatpush.bf16.xpose.msra.mxu0 0
    %252 = vmatpush.bf16.xpose.msra.mxu0 0
    %253 = vmatpush.bf16.xpose.msra.mxu0 0
    %254 = vmatpush.bf16.xpose.msra.mxu0 0
    %255 = vmatpush.bf16.xpose.msra.mxu0 0
    %256 = vmatpush.bf16.xpose.msra.mxu0 0
    %257 = vmatpush.bf16.xpose.msra.mxu0 %v249
    %258 = vmatpush.bf16.xpose.msra.mxu0 %v246
    %259 = vmatmul.bf16.gmra.mxu0 %v243
    %v260 = vpop.f32.mrf.mxu0
    %v261 = vadd.f32 0.0, %v260
    %v262 = vpop.f32.mrf.mxu0
    %263 = vdwg.mxu0
    %v268 = vunpack.c.l.b16 %v192
    %v269 = vunpack.c.l.b16 %v193
    %v270 = vunpack.c.l.b16 %v194
    %v271 = vunpack.c.l.b16 %v195
    %v272 = vpack.c.b16 %v269, %v268
    %v273 = vpack.c.b16 %v271, %v270
    %v275 = vsel %vm72, %v182, 0
    %v278 = vsel %vm72, %v272, 0
    %v281 = vsel %vm72, %v273, 0
    %283 = vmatpush.bf16.xpose.msra.mxu0 0
    %284 = vmatpush.bf16.xpose.msra.mxu0 0
    %285 = vmatpush.bf16.xpose.msra.mxu0 0
    %286 = vmatpush.bf16.xpose.msra.mxu0 0
    %287 = vmatpush.bf16.xpose.msra.mxu0 0
    %288 = vmatpush.bf16.xpose.msra.mxu0 0
    %289 = vmatpush.bf16.xpose.msra.mxu0 %v281
    %290 = vmatpush.bf16.xpose.msra.mxu0 %v278
    %291 = vmatmul.bf16.gmra.mxu0 %v275
    %v292 = vpop.f32.mrf.mxu0
    %v293 = vadd.f32 0.0, %v292
    %v294 = vpop.f32.mrf.mxu0
    %295 = vdwg.mxu0
    %v300 = vunpack.c.l.b16 %v196
    %v301 = vunpack.c.l.b16 %v197
    %v302 = vunpack.c.l.b16 %v198
    %v303 = vunpack.c.l.b16 %v199
    %v304 = vpack.c.b16 %v301, %v300
    %v305 = vpack.c.b16 %v303, %v302
    %v307 = vsel %vm72, %v183, 0
    %v310 = vsel %vm72, %v304, 0
    %v313 = vsel %vm72, %v305, 0
    %315 = vmatpush.bf16.xpose.msra.mxu0 0
    %316 = vmatpush.bf16.xpose.msra.mxu0 0
    %317 = vmatpush.bf16.xpose.msra.mxu0 0
    %318 = vmatpush.bf16.xpose.msra.mxu0 0
    %319 = vmatpush.bf16.xpose.msra.mxu0 0
    %320 = vmatpush.bf16.xpose.msra.mxu0 0
    %321 = vmatpush.bf16.xpose.msra.mxu0 %v313
    %322 = vmatpush.bf16.xpose.msra.mxu0 %v310
    %323 = vmatmul.bf16.gmra.mxu0 %v307
    %v324 = vpop.f32.mrf.mxu0
    %v325 = vadd.f32 0.0, %v324
    %v326 = vpop.f32.mrf.mxu0
    %327 = vdwg.mxu0
    %v328 = vsel %vm72, %v229, -inf
    %329 = vmax.xlane.f32.xlu0 %v328
    %v330 = vpop.xlane.xlu0 %329
    %v331 = vsel %vm72, %v261, -inf
    %332 = vmax.xlane.f32.xlu0 %v331
    %v333 = vpop.xlane.xlu0 %332
    %v334 = vsel %vm72, %v293, -inf
    %335 = vmax.xlane.f32.xlu0 %v334
    %v336 = vpop.xlane.xlu0 %335
    %v337 = vsel %vm72, %v325, -inf
    %338 = vmax.xlane.f32.xlu0 %v337
    %v339 = vpop.xlane.xlu0 %338
    %v340 = vsub.f32 %v229, %v330
    %v341 = vsub.f32 %v261, %v333
    %v342 = vsub.f32 %v293, %v336
    %v343 = vsub.f32 %v325, %v339
    %v344 = vmul.f32 %v340, 1.442695
    %v345 = vpow.pop %v344
    %v346 = vmul.f32 %v341, 1.442695
    %v347 = vpow.pop %v346
    %v348 = vmul.f32 %v342, 1.442695
    %v349 = vpow.pop %v348
    %v350 = vmul.f32 %v343, 1.442695
    %v351 = vpow.pop %v350
    %v352 = vsel %vm72, %v345, 0.0
    %353 = vadd.xlane.f32.xlu0 %v352
    %v354 = vpop.xlane.xlu0 %353
    %v355 = vsel %vm72, %v347, 0.0
    %356 = vadd.xlane.f32.xlu0 %v355
    %v357 = vpop.xlane.xlu0 %356
    %v358 = vsel %vm72, %v349, 0.0
    %359 = vadd.xlane.f32.xlu0 %v358
    %v360 = vpop.xlane.xlu0 %359
    %v361 = vsel %vm72, %v351, 0.0
    %362 = vadd.xlane.f32.xlu0 %v361
    %v363 = vpop.xlane.xlu0 %362
    %v364 = vrcp.pop %v354
    %v365 = vrcp.pop %v357
    %v366 = vrcp.pop %v360
    %v367 = vrcp.pop %v363
    %v368 = vmul.f32 %v345, %v364
    %v369 = vmul.f32 %v347, %v365
    %v370 = vmul.f32 %v349, %v366
    %v371 = vmul.f32 %v351, %v367
    %v372 = vld [vmem:[%s3] sm:$0xff]
    %v373 = vld [vmem:[%s3 + $0x8] sm:$0xff]
    %v374 = vld [vmem:[%s3 + $0x10] sm:$0xff]
    %v375 = vld [vmem:[%s3 + $0x18] sm:$0xff]
    %vm376 = vcmask 31744
    %v377 = vsel %vm376, %v372, -inf
    %378 = vmax.xlane.f32.xlu0 %v377
    %v379 = vpop.xlane.xlu0 %378
    %v380 = vsel %vm376, %v373, -inf
    %381 = vmax.xlane.f32.xlu0 %v380
    %v382 = vpop.xlane.xlu0 %381
    %v383 = vsel %vm376, %v374, -inf
    %384 = vmax.xlane.f32.xlu0 %v383
    %v385 = vpop.xlane.xlu0 %384
    %v386 = vsel %vm376, %v375, -inf
    %387 = vmax.xlane.f32.xlu0 %v386
    %v388 = vpop.xlane.xlu0 %387
    %v389 = vsub.f32 %v372, %v379
    %v390 = vsub.f32 %v373, %v382
    %v391 = vsub.f32 %v374, %v385
    %v392 = vsub.f32 %v375, %v388
    %v393 = vmul.f32 %v389, 1.442695
    %v394 = vpow.pop %v393
    %v395 = vmul.f32 %v390, 1.442695
    %v396 = vpow.pop %v395
    %v397 = vmul.f32 %v391, 1.442695
    %v398 = vpow.pop %v397
    %v399 = vmul.f32 %v392, 1.442695
    %v400 = vpow.pop %v399
    %v401 = vsel %vm376, %v394, 0.0
    %402 = vadd.xlane.f32.xlu0 %v401
    %v403 = vpop.xlane.xlu0 %402
    %v404 = vsel %vm376, %v396, 0.0
    %405 = vadd.xlane.f32.xlu0 %v404
    %v406 = vpop.xlane.xlu0 %405
    %v407 = vsel %vm376, %v398, 0.0
    %408 = vadd.xlane.f32.xlu0 %v407
    %v409 = vpop.xlane.xlu0 %408
    %v410 = vsel %vm376, %v400, 0.0
    %411 = vadd.xlane.f32.xlu0 %v410
    %v412 = vpop.xlane.xlu0 %411
    %v413 = vrcp.pop %v403
    %v414 = vrcp.pop %v406
    %v415 = vrcp.pop %v409
    %v416 = vrcp.pop %v412
    %v417 = vmul.f32 %v394, %v413
    %v418 = vmul.f32 %v396, %v414
    %v419 = vmul.f32 %v398, %v415
    %v420 = vmul.f32 %v400, %v416
    %v421 = vld [vmem:[%s8] sm:$0xf]
    %v423 = vsel %vm376, %v417, 0
    %v426 = vsel %vm376, %v418, 0
    %v429 = vsel %vm376, %v419, 0
    %v432 = vsel %vm376, %v420, 0
    %vm434 = vcmask 1043456
    %v436 = vsel %vm434, %v421, 0
    %438 = vmatpush.msra.mxu0 0.0
    %439 = vmatpush.msra.mxu0 0.0
    %440 = vmatpush.msra.mxu0 0.0
    %441 = vmatpush.msra.mxu0 0.0
    %442 = vmatpush.msra.mxu0 0.0
    %443 = vmatpush.msra.mxu0 0.0
    %444 = vmatpush.msra.mxu0 0.0
    %445 = vmatpush.msra.mxu0 0.0
    %446 = vmatpush.msra.mxu0 0.0
    %447 = vmatpush.msra.mxu0 0.0
    %448 = vmatpush.msra.mxu0 0.0
    %449 = vmatpush.msra.mxu0 0.0
    %450 = vmatpush.msra.mxu0 0.0
    %451 = vmatpush.msra.mxu0 0.0
    %452 = vmatpush.msra.mxu0 0.0
    %453 = vmatpush.msra.mxu0 %v436
    %454 = vmatmul.f32.gmra.mxu0 %v423
    %v455 = vpop.f32.mrf.mxu0
    %v456 = vadd.f32 0.0, %v455
    %457 = vmatmul.f32.gmra.mxu0 %v426
    %v458 = vpop.f32.mrf.mxu0
    %v459 = vadd.f32 0.0, %v458
    %460 = vmatmul.f32.gmra.mxu0 %v429
    %v461 = vpop.f32.mrf.mxu0
    %v462 = vadd.f32 0.0, %v461
    %463 = vmatmul.f32.gmra.mxu0 %v432
    %v464 = vpop.f32.mrf.mxu0
    %v465 = vadd.f32 0.0, %v464
    %466 = vdwg.mxu0
    %v467 = vmul.f32 %v368, %v456
    %v468 = vmul.f32 %v369, %v459
    %v469 = vmul.f32 %v370, %v462
    %v470 = vmul.f32 %v371, %v465
    %v471 = vmul.f32 %v467, 1.442695
    %v472 = vpow.pop %v471
    %v473 = vmul.f32 %v468, 1.442695
    %v474 = vpow.pop %v473
    %v475 = vmul.f32 %v469, 1.442695
    %v476 = vpow.pop %v475
    %v477 = vmul.f32 %v470, 1.442695
    %v478 = vpow.pop %v477
    %v479 = vsel %vm72, %v472, 0.0
    %480 = vadd.xlane.f32.xlu0 %v479
    %v481 = vpop.xlane.xlu0 %480
    %v482 = vsel %vm72, %v474, 0.0
    %483 = vadd.xlane.f32.xlu0 %v482
    %v484 = vpop.xlane.xlu0 %483
    %v485 = vsel %vm72, %v476, 0.0
    %486 = vadd.xlane.f32.xlu0 %v485
    %v487 = vpop.xlane.xlu0 %486
    %v488 = vsel %vm72, %v478, 0.0
    %489 = vadd.xlane.f32.xlu0 %v488
    %v490 = vpop.xlane.xlu0 %489
    %v491 = vrcp.pop %v481
    %v492 = vmul.f32 %v481, %v491
    %v493 = vsub.f32 1.0, %v492
    %v494 = vmul.f32 %v491, %v493
    %v495 = vadd.f32 %v491, %v494
    %vm496 = vweird.f32 %v481
    %vm497 = vweird.f32 %v491
    %vm498 = vmor %vm496, %vm497
    %v499 = vsel %vm498, %v491, %v495
    %v500 = vand.u32 2147483647, %v481
    %vm501 = vcmp.eq.f32.partialorder %v500, 8.507059e+37
    %v502 = vand.u32 %v481, 2147483648
    %v503 = vor.u32 1.1754944e-38, %v502
    %v504 = vsel %vm501, %v503, %v499
    %v505 = vmul.f32 %v472, %v504
    %v506 = vrcp.pop %v484
    %v507 = vmul.f32 %v484, %v506
    %v508 = vsub.f32 1.0, %v507
    %v509 = vmul.f32 %v506, %v508
    %v510 = vadd.f32 %v506, %v509
    %vm511 = vweird.f32 %v484
    %vm512 = vweird.f32 %v506
    %vm513 = vmor %vm511, %vm512
    %v514 = vsel %vm513, %v506, %v510
    %v515 = vand.u32 2147483647, %v484
    %vm516 = vcmp.eq.f32.partialorder %v515, 8.507059e+37
    %v517 = vand.u32 %v484, 2147483648
    %v518 = vor.u32 1.1754944e-38, %v517
    %v519 = vsel %vm516, %v518, %v514
    %v520 = vmul.f32 %v474, %v519
    %v521 = vrcp.pop %v487
    %v522 = vmul.f32 %v487, %v521
    %v523 = vsub.f32 1.0, %v522
    %v524 = vmul.f32 %v521, %v523
    %v525 = vadd.f32 %v521, %v524
    %vm526 = vweird.f32 %v487
    %vm527 = vweird.f32 %v521
    %vm528 = vmor %vm526, %vm527
    %v529 = vsel %vm528, %v521, %v525
    %v530 = vand.u32 2147483647, %v487
    %vm531 = vcmp.eq.f32.partialorder %v530, 8.507059e+37
    %v532 = vand.u32 %v487, 2147483648
    %v533 = vor.u32 1.1754944e-38, %v532
    %v534 = vsel %vm531, %v533, %v529
    %v535 = vmul.f32 %v476, %v534
    %v536 = vrcp.pop %v490
    %v537 = vmul.f32 %v490, %v536
    %v538 = vsub.f32 1.0, %v537
    %v539 = vmul.f32 %v536, %v538
    %v540 = vadd.f32 %v536, %v539
    %vm541 = vweird.f32 %v490
    %vm542 = vweird.f32 %v536
    %vm543 = vmor %vm541, %vm542
    %v544 = vsel %vm543, %v536, %v540
    %v545 = vand.u32 2147483647, %v490
    %vm546 = vcmp.eq.f32.partialorder %v545, 8.507059e+37
    %v547 = vand.u32 %v490, 2147483648
    %v548 = vor.u32 1.1754944e-38, %v547
    %v549 = vsel %vm546, %v548, %v544
    %v550 = vmul.f32 %v478, %v549
    %v551 = vld [vmem:[%s2] sm:$0xff]
    %v552 = vld [vmem:[%s2 + $0x8] sm:$0xff]
    %v553 = vld [vmem:[%s2 + $0x10] sm:$0xff]
    %v554 = vld [vmem:[%s2 + $0x18] sm:$0xff]
    %v555 = vld [vmem:[%s2 + $0x20] sm:$0xff]
    %v556 = vld [vmem:[%s2 + $0x28] sm:$0xff]
    %v557 = vld [vmem:[%s2 + $0x30] sm:$0xff]
    %v558 = vld [vmem:[%s2 + $0x38] sm:$0xff]
    %v559 = vld [vmem:[%s2 + $0x40] sm:$0xff]
    %v560 = vld [vmem:[%s2 + $0x48] sm:$0xff]
    %v561 = vld [vmem:[%s2 + $0x50] sm:$0xff]
    %v562 = vld [vmem:[%s2 + $0x58] sm:$0xff]
    %v563 = vld [vmem:[%s2 + $0x60] sm:$0xff]
    %v564 = vld [vmem:[%s2 + $0x68] sm:$0xff]
    %v565 = vld [vmem:[%s2 + $0x70] sm:$0xff]
    %v566 = vld [vmem:[%s2 + $0x78] sm:$0xff]
    %v567 = vpack.c.bf16 %v552, %v551
    %v568 = vpack.c.bf16 %v554, %v553
    %v569 = vpack.c.bf16 %v556, %v555
    %v570 = vpack.c.bf16 %v558, %v557
    %v571 = vpack.c.bf16 %v560, %v559
    %v572 = vpack.c.bf16 %v562, %v561
    %v573 = vpack.c.bf16 %v564, %v563
    %v574 = vpack.c.bf16 %v566, %v565
    %v575 = vld [vmem:[%s6] sm:$0xff]
    %v576 = vld [vmem:[%s6 + $0x8] sm:$0xff]
    %v577 = vpack.c.bf16 %v576, %v575
    %v578 = vperm.slane %v34, 2
    %v580 = vsel %vm102, %v567, 0
    %v583 = vsel %vm102, %v568, 0
    %v586 = vsel %vm102, %v569, 0
    %v589 = vsel %vm102, %v570, 0
    %v592 = vsel %vm102, %v571, 0
    %v595 = vsel %vm102, %v572, 0
    %v598 = vsel %vm102, %v573, 0
    %v601 = vsel %vm102, %v574, 0
    %603 = vmatpush.bf16.msra.mxu0 0
    %604 = vmatpush.bf16.msra.mxu0 0
    %605 = vmatpush.bf16.msra.mxu0 0
    %606 = vmatpush.bf16.msra.mxu0 0
    %607 = vmatpush.bf16.msra.mxu0 0
    %608 = vmatpush.bf16.msra.mxu0 0
    %609 = vmatpush.bf16.msra.mxu0 0
    %610 = vmatpush.bf16.msra.mxu0 %v577
    %611 = vmatmul.bf16.gmra.mxu0 %v580
    %v612 = vpop.f32.mrf.mxu0
    %v613 = vadd.f32 %v578, %v612
    %v614 = vpop.f32.mrf.mxu0
    %v615 = vadd.f32 %v578, %v614
    %616 = vmatmul.bf16.gmra.mxu0 %v583
    %v617 = vpop.f32.mrf.mxu0
    %v618 = vadd.f32 %v578, %v617
    %v619 = vpop.f32.mrf.mxu0
    %v620 = vadd.f32 %v578, %v619
    %621 = vmatmul.bf16.gmra.mxu0 %v586
    %v622 = vpop.f32.mrf.mxu0
    %v623 = vadd.f32 %v578, %v622
    %v624 = vpop.f32.mrf.mxu0
    %v625 = vadd.f32 %v578, %v624
    %626 = vmatmul.bf16.gmra.mxu0 %v589
    %v627 = vpop.f32.mrf.mxu0
    %v628 = vadd.f32 %v578, %v627
    %v629 = vpop.f32.mrf.mxu0
    %v630 = vadd.f32 %v578, %v629
    %631 = vmatmul.bf16.gmra.mxu0 %v592
    %v632 = vpop.f32.mrf.mxu0
    %v633 = vadd.f32 %v578, %v632
    %v634 = vpop.f32.mrf.mxu0
    %v635 = vadd.f32 %v578, %v634
    %636 = vmatmul.bf16.gmra.mxu0 %v595
    %v637 = vpop.f32.mrf.mxu0
    %v638 = vadd.f32 %v578, %v637
    %v639 = vpop.f32.mrf.mxu0
    %v640 = vadd.f32 %v578, %v639
    %641 = vmatmul.bf16.gmra.mxu0 %v598
    %v642 = vpop.f32.mrf.mxu0
    %v643 = vadd.f32 %v578, %v642
    %v644 = vpop.f32.mrf.mxu0
    %v645 = vadd.f32 %v578, %v644
    %646 = vmatmul.bf16.gmra.mxu0 %v601
    %v647 = vpop.f32.mrf.mxu0
    %v648 = vadd.f32 %v578, %v647
    %v649 = vpop.f32.mrf.mxu0
    %v650 = vadd.f32 %v578, %v649
    %651 = vdwg.mxu0
    %v652 = vpack.c.bf16 %v505, %v505
    %v653 = vpack.c.bf16 %v520, %v520
    %v654 = vpack.c.bf16 %v535, %v535
    %v655 = vpack.c.bf16 %v550, %v550
    %v656 = vpack.c.bf16 %v613, %v613
    %v657 = vpack.c.bf16 %v615, %v615
    %v658 = vpack.c.bf16 %v618, %v618
    %v659 = vpack.c.bf16 %v620, %v620
    %v660 = vpack.c.bf16 %v623, %v623
    %v661 = vpack.c.bf16 %v625, %v625
    %v662 = vpack.c.bf16 %v628, %v628
    %v663 = vpack.c.bf16 %v630, %v630
    %v664 = vpack.c.bf16 %v633, %v633
    %v665 = vpack.c.bf16 %v635, %v635
    %v666 = vpack.c.bf16 %v638, %v638
    %v667 = vpack.c.bf16 %v640, %v640
    %v668 = vpack.c.bf16 %v643, %v643
    %v669 = vpack.c.bf16 %v645, %v645
    %v670 = vpack.c.bf16 %v648, %v648
    %v671 = vpack.c.bf16 %v650, %v650
    %v676 = vunpack.c.l.b16 %v656
    %v677 = vunpack.c.l.b16 %v657
    %v678 = vunpack.c.l.b16 %v658
    %v679 = vunpack.c.l.b16 %v659
    %v680 = vpack.c.b16 %v677, %v676
    %v681 = vpack.c.b16 %v679, %v678
    %v685 = vsel %vm72, %v652, 0
    %687 = vmatpush.bf16.msra.mxu0 0
    %688 = vmatpush.bf16.msra.mxu0 0
    %689 = vmatpush.bf16.msra.mxu0 0
    %690 = vmatpush.bf16.msra.mxu0 0
    %691 = vmatpush.bf16.msra.mxu0 0
    %692 = vmatpush.bf16.msra.mxu0 0
    %693 = vmatpush.bf16.msra.mxu0 %v681
    %694 = vmatpush.bf16.msra.mxu0 %v680
    %695 = vmatmul.bf16.gmra.mxu0 %v685
    %v696 = vpop.f32.mrf.mxu0
    %v697 = vadd.f32 0.0, %v696
    %v698 = vpop.f32.mrf.mxu0
    %699 = vdwg.mxu0
    %v704 = vunpack.c.l.b16 %v660
    %v705 = vunpack.c.l.b16 %v661
    %v706 = vunpack.c.l.b16 %v662
    %v707 = vunpack.c.l.b16 %v663
    %v708 = vpack.c.b16 %v705, %v704
    %v709 = vpack.c.b16 %v707, %v706
    %v713 = vsel %vm72, %v653, 0
    %715 = vmatpush.bf16.msra.mxu0 0
    %716 = vmatpush.bf16.msra.mxu0 0
    %717 = vmatpush.bf16.msra.mxu0 0
    %718 = vmatpush.bf16.msra.mxu0 0
    %719 = vmatpush.bf16.msra.mxu0 0
    %720 = vmatpush.bf16.msra.mxu0 0
    %721 = vmatpush.bf16.msra.mxu0 %v709
    %722 = vmatpush.bf16.msra.mxu0 %v708
    %723 = vmatmul.bf16.gmra.mxu0 %v713
    %v724 = vpop.f32.mrf.mxu0
    %v725 = vadd.f32 0.0, %v724
    %v726 = vpop.f32.mrf.mxu0
    %727 = vdwg.mxu0
    %v732 = vunpack.c.l.b16 %v664
    %v733 = vunpack.c.l.b16 %v665
    %v734 = vunpack.c.l.b16 %v666
    %v735 = vunpack.c.l.b16 %v667
    %v736 = vpack.c.b16 %v733, %v732
    %v737 = vpack.c.b16 %v735, %v734
    %v741 = vsel %vm72, %v654, 0
    %743 = vmatpush.bf16.msra.mxu0 0
    %744 = vmatpush.bf16.msra.mxu0 0
    %745 = vmatpush.bf16.msra.mxu0 0
    %746 = vmatpush.bf16.msra.mxu0 0
    %747 = vmatpush.bf16.msra.mxu0 0
    %748 = vmatpush.bf16.msra.mxu0 0
    %749 = vmatpush.bf16.msra.mxu0 %v737
    %750 = vmatpush.bf16.msra.mxu0 %v736
    %751 = vmatmul.bf16.gmra.mxu0 %v741
    %v752 = vpop.f32.mrf.mxu0
    %v753 = vadd.f32 0.0, %v752
    %v754 = vpop.f32.mrf.mxu0
    %755 = vdwg.mxu0
    %v760 = vunpack.c.l.b16 %v668
    %v761 = vunpack.c.l.b16 %v669
    %v762 = vunpack.c.l.b16 %v670
    %v763 = vunpack.c.l.b16 %v671
    %v764 = vpack.c.b16 %v761, %v760
    %v765 = vpack.c.b16 %v763, %v762
    %v769 = vsel %vm72, %v655, 0
    %771 = vmatpush.bf16.msra.mxu0 0
    %772 = vmatpush.bf16.msra.mxu0 0
    %773 = vmatpush.bf16.msra.mxu0 0
    %774 = vmatpush.bf16.msra.mxu0 0
    %775 = vmatpush.bf16.msra.mxu0 0
    %776 = vmatpush.bf16.msra.mxu0 0
    %777 = vmatpush.bf16.msra.mxu0 %v765
    %778 = vmatpush.bf16.msra.mxu0 %v764
    %779 = vmatmul.bf16.gmra.mxu0 %v769
    %v780 = vpop.f32.mrf.mxu0
    %v781 = vadd.f32 0.0, %v780
    %v782 = vpop.f32.mrf.mxu0
    %783 = vdwg.mxu0
    %v784 = vrot.slane %v753, 4
    %vm785 = vcmask 1047556
    %v786 = vsel %vm785, %v784, %v697
    %v787 = vrot.slane %v697, 4
    %v788 = vsel %vm785, %v753, %v787
    %v790 = vunpack.c.l.s4 1983009808
    %v791 = vunpack.c.0.s8 %v790
    %v792 = vperm.slane %v786, %v791
    %v794 = vunpack.c.l.s4 1983009808
    %v795 = vunpack.c.0.s8 %v794
    %v796 = vperm.slane %v788, %v795
    %v797 = vrot.slane %v781, 4
    %v798 = vsel %vm785, %v797, %v725
    %v799 = vrot.slane %v725, 4
    %v800 = vsel %vm785, %v781, %v799
    %v802 = vunpack.c.l.s4 1983009808
    %v803 = vunpack.c.0.s8 %v802
    %v804 = vperm.slane %v798, %v803
    %v806 = vunpack.c.l.s4 1983009808
    %v807 = vunpack.c.0.s8 %v806
    %v808 = vperm.slane %v800, %v807
    %v809 = vrot.slane %v804, 4
    %v810 = vsel %vm785, %v809, %v792
    %v811 = vrot.slane %v792, 4
    %v812 = vsel %vm785, %v804, %v811
    %v814 = vunpack.c.l.s4 1934713408
    %v815 = vunpack.c.0.s8 %v814
    %v816 = vperm.slane %v810, %v815
    %v818 = vunpack.c.l.s4 1934713408
    %v819 = vunpack.c.0.s8 %v818
    %v820 = vperm.slane %v812, %v819
    %v821 = vrot.slane %v808, 4
    %v822 = vsel %vm785, %v821, %v796
    %v823 = vrot.slane %v796, 4
    %v824 = vsel %vm785, %v808, %v823
    %v826 = vunpack.c.l.s4 1934713408
    %v827 = vunpack.c.0.s8 %v826
    %v828 = vperm.slane %v822, %v827
    %v830 = vunpack.c.l.s4 1934713408
    %v831 = vunpack.c.0.s8 %v830
    %v832 = vperm.slane %v824, %v831
    %v833 = vrot.slane %v816, 4
    %v834 = vsel %vm785, 0.0, %v833
    %v835 = vrot.slane %v820, 4
    %v836 = vsel %vm785, 0.0, %v835
    %v837 = vrot.slane %v828, 4
    %v838 = vsel %vm785, 0.0, %v837
    %v839 = vrot.slane %v832, 4
    %v840 = vsel %vm785, 0.0, %v839
    %842 = vrot.lane.b32.xlu0 %v834, 32
    %v843 = vpop.permute.xlu0 %842
    %846 = vrot.lane.b32.xlu0 %v820, 64
    %v847 = vpop.permute.xlu0 %846
    %850 = vrot.lane.b32.xlu0 %v836, 96
    %v851 = vpop.permute.xlu0 %850
    %854 = vrot.lane.b32.xlu0 %v838, 32
    %v855 = vpop.permute.xlu0 %854
    %858 = vrot.lane.b32.xlu0 %v832, 64
    %v859 = vpop.permute.xlu0 %858
    %862 = vrot.lane.b32.xlu0 %v840, 96
    %v863 = vpop.permute.xlu0 %862
    %v865 = vsel %vm72, %v816, %v843
    %vm866 = vcmask 523264
    %v867 = vsel %vm866, %v865, %v847
    %vm868 = vcmask 785408
    %v869 = vsel %vm868, %v867, %v851
    %v870 = vsel %vm72, %v828, %v855
    %v871 = vsel %vm866, %v870, %v859
    %v872 = vsel %vm868, %v871, %v863
    %v875 = vrot.slane %v872, 4
    %v876 = vsel %vm434, %v869, %v875
    %878 = vst [vmem:[#allocation2] sm:$0xff] %v876
    // Predicated region
    $region38: #{tpu_custom_call.1} parent=1 // pred_check
      _
    $region39: #{tpu_custom_call.1} parent=1 // pred_check_branch
      %880 = sbr.rel (0) target = $region41
    $region40: #{tpu_custom_call.1} parent=1 // pred_region
      %882 = vsyncadd [#allocation3], 0
      %s884 = sshll.u32 [#allocation2], 4
      %s885 = int_to_ptr.vmem [resolvable:$true] %s884
      %s886 = sshll.u32 %s9, 4
      %s887 = int_to_ptr.hbm [resolvable:$true] %s886
      %889 = dma.vmem_to_hbm [thread:$0]  %s885, 128, %s887, [#allocation3]
    $region41: #{tpu_custom_call.1} parent=1 // pred_fallthru
      _
    // Predicated region
    $region42: #{tpu_custom_call.1} parent=1 // pred_check
      _
    $region43: #{tpu_custom_call.1} parent=1 // pred_check_branch
      %891 = sbr.rel (0) target = $region45
    $region44: #{tpu_custom_call.1} parent=1 // pred_region
      %893 = dma.done [#allocation3], 128
    $region45: #{tpu_custom_call.1} parent=1 // pred_fallthru
      _
    %894 = vsyncpa [#allocation3], 1

</llo_original>
